<compile_context>
chip_gen: v7x
topology: tpu7x:2x2x1
jax: 0.10.0
libtpu: 0.0.40
codegen_flags: <defaults>
</compile_context>

<pallas_src>
import functools

import jax
import jax.numpy as jnp
from jax.experimental import pallas as pl
from jax.experimental.pallas import tpu as pltpu

LANES = 128
SUBLANES = 8
SMOOTH = 0.0001


@functools.lru_cache(maxsize=1)
def _tensorcores_per_chip():
    """2 on multi-TensorCore chips (v7x); 1 on v5e/v6e and anything unknown."""
    try:
        kind = jax.devices()[0].device_kind.lower()
        if "v7" in kind or "7x" in kind:
            return 2
    except Exception:
        pass
    return 1


def _dice_kernel(o_ref, m_ref, inter_ref, union_ref, *,
                 rows, tile_rows, tiles_per_core, acc_rows, need_mask):
    """Grid = (core, tile).  Each core folds o*m and o+m into its own
    vreg-shaped output block; the scalar reduce + dice ratio happen in the
    wrapper."""
    c = pl.program_id(0)   # TensorCore shard
    i = pl.program_id(1)   # streaming tile within the shard

    # Output blocks are per-core accumulators (their block index is constant
    # along the "arbitrary" tile axis) -- zero them on each core's first tile.
    @pl.when(i == 0)
    def _init():
        inter_ref[...] = jnp.zeros_like(inter_ref)
        union_ref[...] = jnp.zeros_like(union_ref)

    o = o_ref[...].astype(jnp.float32)
    m = m_ref[...].astype(jnp.float32)

    def accumulate(o_t, m_t):
        prod = o_t * m_t            # intersection contribution
        tot = o_t + m_t             # fused union: sum(o+m) == sum(o)+sum(m)
        if tile_rows != acc_rows:
            # Fold the (tile_rows, 128) tile down to the vreg-shaped
            # accumulator with pure VPU adds (reduces the leading axis only).
            prod = prod.reshape(-1, acc_rows, LANES).sum(axis=0)
            tot = tot.reshape(-1, acc_rows, LANES).sum(axis=0)
        inter_ref[...] += prod[None]
        union_ref[...] += tot[None]

    if not need_mask:
        accumulate(o, m)
    else:
        blk = c * tiles_per_core + i              # logical (unclamped) block id
        # Only the ragged last real tile and phantom tiles (per-core rounding)
        # extend past `rows`; everything else takes the unmasked fast path.
        is_edge = (blk + 1) * tile_rows > rows

        @pl.when(jnp.logical_not(is_edge))
        def _full_tile():
            accumulate(o, m)

        @pl.when(is_edge)
        def _edge_tile():
            row0 = blk * tile_rows
            rid = row0 + jax.lax.broadcasted_iota(jnp.int32, (tile_rows, 1), 0)
            keep = rid < rows
            accumulate(jnp.where(keep, o, 0.0), jnp.where(keep, m, 0.0))


@functools.partial(jax.jit, static_argnames=("tile_rows",))
def dice_loss(output, mask, *, tile_rows=4096):
    """Dice loss: 1 - (2*sum(o*m)+eps)/(sum(o)+sum(m)+eps) over flattened inputs."""
    o = output.reshape(-1)
    m = mask.reshape(-1)
    assert o.shape[0] == m.shape[0], "output and mask must have the same numel"
    n = o.shape[0]

    # 128-aligned prefix goes through the kernel (contiguous slice + reshape,
    # no jnp.pad copy); the <=127-element tail is a tiny wrapper-side sum.
    n_main = (n // LANES) * LANES
    rows = n_main // LANES

    inter = jnp.float32(0.0)
    union = jnp.float32(0.0)

    if rows > 0:
        o2 = o[:n_main].reshape(rows, LANES)
        m2 = m[:n_main].reshape(rows, LANES)

        # --- tile choice ------------------------------------------------------
        # Keep HBM blocks ~2 MiB regardless of dtype (bf16 gets 2x the rows).
        itemsize = max(o2.dtype.itemsize, m2.dtype.itemsize)
        eff_rows = tile_rows * max(1, 4 // max(1, itemsize))
        if rows <= eff_rows and rows % SUBLANES == 0:
            tr = rows                                   # single full block
        elif rows <= SUBLANES:
            tr = rows                                   # tiny input, full block
        else:
            tr = min((eff_rows // SUBLANES) * SUBLANES,
                     (rows // SUBLANES) * SUBLANES)     # 8-aligned streaming tile
        acc_rows = SUBLANES if tr % SUBLANES == 0 else tr
        num_tiles = pl.cdiv(rows, tr)

        # --- core split: only real on multi-TensorCore chips (v7x) -------------
        num_cores = min(_tensorcores_per_chip(), num_tiles)
        tiles_per_core = pl.cdiv(num_tiles, num_cores)
        need_mask = num_cores * tiles_per_core * tr != rows
        if num_cores > 1 and hasattr(pltpu, "CORE_PARALLEL"):
            dim_sems = (pltpu.CORE_PARALLEL, pltpu.ARBITRARY)
        else:
            dim_sems = ("parallel" if num_cores > 1 else "arbitrary", "arbitrary")

        kernel = functools.partial(
            _dice_kernel,
            rows=rows, tile_rows=tr, tiles_per_core=tiles_per_core,
            acc_rows=acc_rows, need_mask=need_mask)

        # Clamp so phantom tiles (per-core rounding) never DMA out of bounds;
        # their contribution is zeroed by the in-kernel edge mask.
        def in_map(c, i):
            return (jnp.minimum(c * tiles_per_core + i, num_tiles - 1), 0)

        # VMEM actually used: 2 inputs x 2 pipeline buffers + 2 f32 accumulator
        # outputs x 2 buffers, plus generous headroom.
        vmem_need = (2 * tr * LANES * (o2.dtype.itemsize + m2.dtype.itemsize)
                     + 2 * 2 * acc_rows * LANES * 4)
        vmem_limit = int(min(max(vmem_need + (8 << 20), 32 << 20), 64 << 20))

        inter_out, union_out = pl.pallas_call(
            kernel,
            out_shape=(
                jax.ShapeDtypeStruct((num_cores, acc_rows, LANES), jnp.float32),
                jax.ShapeDtypeStruct((num_cores, acc_rows, LANES), jnp.float32),
            ),
            grid_spec=pltpu.PrefetchScalarGridSpec(
                num_scalar_prefetch=0,
                grid=(num_cores, tiles_per_core),
                in_specs=[
                    pl.BlockSpec((tr, LANES), in_map),
                    pl.BlockSpec((tr, LANES), in_map),
                ],
                out_specs=[
                    pl.BlockSpec((1, acc_rows, LANES), lambda c, i: (c, 0, 0)),
                    pl.BlockSpec((1, acc_rows, LANES), lambda c, i: (c, 0, 0)),
                ],
            ),
            compiler_params=pltpu.CompilerParams(
                dimension_semantics=dim_sems,
                vmem_limit_bytes=vmem_limit,
            ),
        )(o2, m2)

        # Single tiny cross-lane reduce (2 * num_cores * acc_rows * 128 floats).
        inter = inter + jnp.sum(inter_out)
        union = union + jnp.sum(union_out)

    rem = n - n_main
    if rem:
        o_tail = o[n_main:].astype(jnp.float32)
        m_tail = m[n_main:].astype(jnp.float32)
        inter = inter + jnp.sum(o_tail * m_tail)
        union = union + jnp.sum(o_tail) + jnp.sum(m_tail)

    dice = (2.0 * inter + SMOOTH) / (union + SMOOTH)
    return 1.0 - dice


def _dice_loss_ref(output, mask):
    o = output.reshape(-1).astype(jnp.float32)
    m = mask.reshape(-1).astype(jnp.float32)
    inter = jnp.sum(o * m)
    union = jnp.sum(o) + jnp.sum(m)
    return 1.0 - (2.0 * inter + SMOOTH) / (union + SMOOTH)


if __name__ == "__main__":
    key = jax.random.PRNGKey(0)

    def make_inputs(k, shape, dtype=jnp.float32):
        k1, k2 = jax.random.split(k)
        out = jax.nn.sigmoid(jax.random.normal(k1, shape, jnp.float32)).astype(dtype)
        msk = (jax.random.uniform(k2, shape) > 0.5).astype(dtype)
        return out, msk

    k0, k1, k2, k3 = jax.random.split(key, 4)

    # 1) Small NCHW case (the module's typical segmentation inputs).
    out, msk = make_inputs(k0, (2, 4, 16, 16))
    loss = jax.block_until_ready(dice_loss(out, msk))
    ref = _dice_loss_ref(out, msk)
    assert jnp.allclose(loss, ref, atol=1e-6, rtol=1e-6), (loss, ref)

    # 2) Larger case streamed in native bf16 (single full block).
    out, msk = make_inputs(k1, (4, 4, 128, 128), jnp.bfloat16)
    loss = jax.block_until_ready(dice_loss(out, msk))
    ref = _dice_loss_ref(out, msk)
    assert jnp.allclose(loss, ref, atol=1e-4, rtol=1e-4), (loss, ref)

    # 3) Ragged case: numel % 128 != 0 (wrapper tail) and rows % 8 != 0
    #    (edge-masked last tile in the kernel).
    out, msk = make_inputs(k2, (2, 3, 33, 37))
    loss = jax.block_until_ready(dice_loss(out, msk))
    ref = _dice_loss_ref(out, msk)
    assert jnp.allclose(loss, ref, atol=1e-5, rtol=1e-5), (loss, ref)

    # 4) Multi-tile streaming case with a ragged last tile (rows > tile_rows,
    #    rows % tile_rows != 0) plus a wrapper tail — exercises the gated mask.
    out, msk = make_inputs(k3, (2, 2, 363, 363))
    loss = jax.block_until_ready(dice_loss(out, msk))
    ref = _dice_loss_ref(out, msk)
    assert jnp.allclose(loss, ref, atol=1e-4, rtol=1e-4), (loss, ref)

    print("KERNEL_OK")
</pallas_src>

<mosaic_0001>
module attributes {stable_mosaic.version = 11 : i64} {
  func.func @_dice_kernel(%arg0: i32, %arg1: i32, %arg2: memref<16x128xf32, #tpu.memory_space<vmem>>, %arg3: memref<16x128xf32, #tpu.memory_space<vmem>>, %arg4: memref<1x8x128xf32, #tpu.memory_space<vmem>>, %arg5: memref<1x8x128xf32, #tpu.memory_space<vmem>>) attributes {dimension_semantics = [#tpu.dimension_semantics<arbitrary>, #tpu.dimension_semantics<arbitrary>], iteration_bounds = array<i64: 1, 1>, scalar_prefetch = 0 : i64, scratch_operands = 0 : i64, tpu.core_type = #tpu.core_type<tc>, window_params = [{transform_indices = @transform_0, window_bounds = array<i64: 16, 128>}, {transform_indices = @transform_1, window_bounds = array<i64: 16, 128>}, {transform_indices = @transform_2, window_bounds = array<i64: 1, 8, 128>}, {transform_indices = @transform_3, window_bounds = array<i64: 1, 8, 128>}]} {
    %c0_i32 = arith.constant 0 : i32
    %0 = arith.cmpi eq, %arg1, %c0_i32 : i32
    %1 = arith.extui %0 : i1 to i32
    %c0_i32_0 = arith.constant 0 : i32
    %2 = arith.cmpi ne, %1, %c0_i32_0 : i32
    scf.if %2 {
      %cst_17 = arith.constant 0.000000e+00 : f32
      %19 = vector.broadcast %cst_17 : f32 to vector<1x8x128xf32>
      %c0_18 = arith.constant 0 : index
      %c0_19 = arith.constant 0 : index
      %c0_20 = arith.constant 0 : index
      %20 = vector.load %arg4[%c0_18, %c0_19, %c0_20] : memref<1x8x128xf32, #tpu.memory_space<vmem>>, vector<1x8x128xf32>
      tpu.vector_store %arg4[%c0_18, %c0_19, %c0_20], %19 {strides = array<i32>} : memref<1x8x128xf32, #tpu.memory_space<vmem>>, vector<1x8x128xf32>,
      %cst_21 = arith.constant 0.000000e+00 : f32
      %21 = vector.broadcast %cst_21 : f32 to vector<1x8x128xf32>
      %c0_22 = arith.constant 0 : index
      %c0_23 = arith.constant 0 : index
      %c0_24 = arith.constant 0 : index
      %22 = vector.load %arg5[%c0_22, %c0_23, %c0_24] : memref<1x8x128xf32, #tpu.memory_space<vmem>>, vector<1x8x128xf32>
      tpu.vector_store %arg5[%c0_22, %c0_23, %c0_24], %21 {strides = array<i32>} : memref<1x8x128xf32, #tpu.memory_space<vmem>>, vector<1x8x128xf32>,
    } else {
    }
    %c0 = arith.constant 0 : index
    %c0_1 = arith.constant 0 : index
    %3 = vector.load %arg2[%c0, %c0_1] : memref<16x128xf32, #tpu.memory_space<vmem>>, vector<16x128xf32>
    %c0_2 = arith.constant 0 : index
    %c0_3 = arith.constant 0 : index
    %4 = vector.load %arg3[%c0_2, %c0_3] : memref<16x128xf32, #tpu.memory_space<vmem>>, vector<16x128xf32>
    %5 = arith.mulf %3, %4 : vector<16x128xf32>
    %6 = arith.addf %3, %4 : vector<16x128xf32>
    %7 = vector.shape_cast %5 : vector<16x128xf32> to vector<2x8x128xf32>
    %cst = arith.constant dense<0.000000e+00> : vector<8x128xf32>
    %8 = vector.multi_reduction <add>, %7, %cst [0] : vector<2x8x128xf32> to vector<8x128xf32>
    %9 = vector.shape_cast %6 : vector<16x128xf32> to vector<2x8x128xf32>
    %cst_4 = arith.constant dense<0.000000e+00> : vector<8x128xf32>
    %10 = vector.multi_reduction <add>, %9, %cst_4 [0] : vector<2x8x128xf32> to vector<8x128xf32>
    %c0_5 = arith.constant 0 : index
    %c0_6 = arith.constant 0 : index
    %c0_7 = arith.constant 0 : index
    %11 = vector.load %arg4[%c0_5, %c0_6, %c0_7] : memref<1x8x128xf32, #tpu.memory_space<vmem>>, vector<1x8x128xf32>
    %12 = vector.shape_cast %8 : vector<8x128xf32> to vector<1x8x128xf32>
    %13 = arith.addf %11, %12 : vector<1x8x128xf32>
    %c0_8 = arith.constant 0 : index
    %c0_9 = arith.constant 0 : index
    %c0_10 = arith.constant 0 : index
    %14 = vector.load %arg4[%c0_8, %c0_9, %c0_10] : memref<1x8x128xf32, #tpu.memory_space<vmem>>, vector<1x8x128xf32>
    tpu.vector_store %arg4[%c0_8, %c0_9, %c0_10], %13 {strides = array<i32>} : memref<1x8x128xf32, #tpu.memory_space<vmem>>, vector<1x8x128xf32>,
    %c0_11 = arith.constant 0 : index
    %c0_12 = arith.constant 0 : index
    %c0_13 = arith.constant 0 : index
    %15 = vector.load %arg5[%c0_11, %c0_12, %c0_13] : memref<1x8x128xf32, #tpu.memory_space<vmem>>, vector<1x8x128xf32>
    %16 = vector.shape_cast %10 : vector<8x128xf32> to vector<1x8x128xf32>
    %17 = arith.addf %15, %16 : vector<1x8x128xf32>
    %c0_14 = arith.constant 0 : index
    %c0_15 = arith.constant 0 : index
    %c0_16 = arith.constant 0 : index
    %18 = vector.load %arg5[%c0_14, %c0_15, %c0_16] : memref<1x8x128xf32, #tpu.memory_space<vmem>>, vector<1x8x128xf32>
    tpu.vector_store %arg5[%c0_14, %c0_15, %c0_16], %17 {strides = array<i32>} : memref<1x8x128xf32, #tpu.memory_space<vmem>>, vector<1x8x128xf32>,
    return
  }
  func.func @transform_0(%arg0: i32, %arg1: i32) -> (i32, i32) {
    %c1_i32 = arith.constant 1 : i32
    %0 = arith.muli %arg0, %c1_i32 : i32
    %1 = arith.addi %0, %arg1 : i32
    %c0_i32 = arith.constant 0 : i32
    %2 = arith.minsi %1, %c0_i32 : i32
    %c0_i32_0 = arith.constant 0 : i32
    %c0_i32_1 = arith.constant 0 : i32
    return %2, %c0_i32_0 : i32, i32
  }
  func.func @transform_1(%arg0: i32, %arg1: i32) -> (i32, i32) {
    %c1_i32 = arith.constant 1 : i32
    %0 = arith.muli %arg0, %c1_i32 : i32
    %1 = arith.addi %0, %arg1 : i32
    %c0_i32 = arith.constant 0 : i32
    %2 = arith.minsi %1, %c0_i32 : i32
    %c0_i32_0 = arith.constant 0 : i32
    %c0_i32_1 = arith.constant 0 : i32
    return %2, %c0_i32_0 : i32, i32
  }
  func.func @transform_2(%arg0: i32, %arg1: i32) -> (i32, i32, i32) {
    %c0_i32 = arith.constant 0 : i32
    %c0_i32_0 = arith.constant 0 : i32
    %c0_i32_1 = arith.constant 0 : i32
    return %arg0, %c0_i32, %c0_i32_0 : i32, i32, i32
  }
  func.func @transform_3(%arg0: i32, %arg1: i32) -> (i32, i32, i32) {
    %c0_i32 = arith.constant 0 : i32
    %c0_i32_0 = arith.constant 0 : i32
    %c0_i32_1 = arith.constant 0 : i32
    return %arg0, %c0_i32, %c0_i32_0 : i32, i32, i32
  }
}

</mosaic_0001>

<llo_original>
// kernel: dice_loss.1
$region0: #{dice_loss.1}
  #allocation0 [shape = 'u32[]', space=smem, size = 0x4, offset = 0x4, fixed_abs, tag = 'smem constant byte address 0x4 - core index']
  #allocation1 [shape = 'u32[144,128]{1,0:T(1,128)}', space=vmem, size = 0x12000, scoped, tag = 'internal scratch']
  %s0 = inlined_call_operand.vmem [shape: f32[16,128], index: 0, kind: input, shape index: {}]
  %s1 = inlined_call_operand.vmem [shape: f32[16,128], index: 1, kind: input, shape index: {}]
  %s2 = inlined_call_operand.vmem [shape: f32[1,8,128], index: 2, kind: output, shape index: {0}]
  %s3 = inlined_call_operand.vmem [shape: f32[1,8,128], index: 3, kind: output, shape index: {1}]
  %4 = xla_tuple %s2, %s3
  %s5 = sld [smem:[#allocation0]]
  $region30: #{dice_loss.1} parent=0
    _
  %s7 = ssub.s32 1, %s5
  %s8 = scalar_select 0, %s7, %s5
  // Predicated region
  $region2: #{dice_loss.1} parent=0 // pred_check
    _
  $region3: #{dice_loss.1} parent=0 // pred_check_branch
    %10 = sbr.rel (0) target = $region5
  $region4: #{dice_loss.1} parent=0 // pred_region
    %s11 = sadd.s32 0, 0
    %p12 = scmp.lt.s32.totalorder %s11, 0
    %s13 = scalar_select %p12, %s11, 0
    %s14 = smul.u32 2, %s13
    %p15 = scmp.lt.s32.totalorder %s14, 1
    %s16 = scalar_select %p15, %s14, 1
    %s17 = smul.addr %s16, 8
    %s18 = scalar_lea.vmem %s0, %s17
    %s19 = sadd.s32 0, 0
    %p20 = scmp.lt.s32.totalorder %s19, 0
    %s21 = scalar_select %p20, %s19, 0
    %s22 = smul.u32 2, %s21
  $region5: #{dice_loss.1} parent=0 // pred_fallthru
    _
  // Predicated region
  $region6: #{dice_loss.1} parent=0 // pred_check
    _
  $region7: #{dice_loss.1} parent=0 // pred_check_branch
    %24 = sbr.rel (0) target = $region9
  $region8: #{dice_loss.1} parent=0 // pred_region
    %s25 = sadd.s32 0, 0
    %p26 = scmp.lt.s32.totalorder %s25, 0
    %s27 = scalar_select %p26, %s25, 0
    %s28 = smul.u32 2, %s27
    %p29 = scmp.lt.s32.totalorder %s28, 1
    %s30 = scalar_select %p29, %s28, 1
    %s31 = smul.addr %s30, 8
    %s32 = scalar_lea.vmem %s1, %s31
    %s33 = sadd.s32 0, 0
    %p34 = scmp.lt.s32.totalorder %s33, 0
    %s35 = scalar_select %p34, %s33, 0
    %s36 = smul.u32 2, %s35
  $region9: #{dice_loss.1} parent=0 // pred_fallthru
    _
  %s37 = sadd.s32 0, 0
  %p38 = scmp.lt.s32.totalorder %s37, 0
  %s39 = scalar_select %p38, %s37, 0
  %s40 = smul.u32 2, %s39
  %p41 = scmp.lt.s32.totalorder %s40, 1
  %s42 = scalar_select %p41, %s40, 1
  %s43 = smul.addr %s42, 8
  %s44 = scalar_lea.vmem %s0, %s43
  %s45 = sadd.s32 0, 0
  %p46 = scmp.lt.s32.totalorder %s45, 0
  %s47 = scalar_select %p46, %s45, 0
  %s48 = smul.u32 2, %s47
  %p49 = scmp.lt.s32.totalorder %s48, 1
  %s50 = scalar_select %p49, %s48, 1
  %s51 = smul.addr %s50, 8
  %s52 = scalar_lea.vmem %s1, %s51
  %s53 = sadd.s32 0, 0
  %p54 = scmp.lt.s32.totalorder %s53, 0
  %s55 = scalar_select %p54, %s53, 0
  %s56 = smul.u32 2, %s55
  %p57 = scmp.lt.s32.totalorder %s56, 1
  %s58 = scalar_select %p57, %s56, 1
  %s59 = smul.addr %s58, 8
  %s60 = scalar_lea.vmem %s0, %s59
  %s61 = sadd.s32 0, 0
  %p62 = scmp.lt.s32.totalorder %s61, 0
  %s63 = scalar_select %p62, %s61, 0
  %s64 = smul.u32 2, %s63
  %s65 = sadd.s32 0, 0
  %p66 = scmp.lt.s32.totalorder %s65, 0
  %s67 = scalar_select %p66, %s65, 0
  %s68 = smul.u32 2, %s67
  %p69 = scmp.lt.s32.totalorder %s68, 1
  %s70 = scalar_select %p69, %s68, 1
  %s71 = smul.addr %s70, 8
  %s72 = scalar_lea.vmem %s1, %s71
  %s73 = sadd.s32 0, 0
  %p74 = scmp.lt.s32.totalorder %s73, 0
  %s75 = scalar_select %p74, %s73, 0
  %s76 = smul.u32 2, %s75
  %p77 = scmp.eq.s32.totalorder 0, 0
  // Predicated region
  $region10: #{dice_loss.1} parent=0 // pred_check
    %p78 = pneg %p77
  $region11: #{dice_loss.1} parent=0 // pred_check_branch
    %80 = sbr.rel (%p78) target = $region13
  $region12: #{dice_loss.1} parent=0 // pred_region
    %81 = vst [vmem:[%s2] sm:$0xff] 0.0
    %82 = vst [vmem:[%s3] sm:$0xff] 0.0
  $region13: #{dice_loss.1} parent=0 // pred_fallthru
    _
  %v83 = vld [vmem:[%s60] sm:$0xff]
  %v84 = vld [vmem:[%s60 + $0x8] sm:$0xff]
  %v85 = vld [vmem:[%s72] sm:$0xff]
  %v86 = vld [vmem:[%s72 + $0x8] sm:$0xff]
  %v87 = vmul.f32 %v83, %v85
  %v88 = vmul.f32 %v84, %v86
  %v89 = vadd.f32 %v83, %v85
  %v90 = vadd.f32 %v84, %v86
  %v91 = vadd.f32 %v87, %v88
  %v92 = vadd.f32 %v89, %v90
  %v93 = vld [vmem:[%s2] sm:$0xff]
  %v94 = vadd.f32 %v93, %v91
  %95 = vst [vmem:[%s2] sm:$0xff] %v94
  %v96 = vld [vmem:[%s3] sm:$0xff]
  %v97 = vadd.f32 %v96, %v92
  %98 = vst [vmem:[%s3] sm:$0xff] %v97
  // Predicated region
  $region14: #{dice_loss.1} parent=0 // pred_check
    _
  $region15: #{dice_loss.1} parent=0 // pred_check_branch
    %100 = sbr.rel (0) target = $region17
  $region16: #{dice_loss.1} parent=0 // pred_region
    _
  $region17: #{dice_loss.1} parent=0 // pred_fallthru
    _
  // Predicated region
  $region18: #{dice_loss.1} parent=0 // pred_check
    _
  $region19: #{dice_loss.1} parent=0 // pred_check_branch
    %102 = sbr.rel (0) target = $region21
  $region20: #{dice_loss.1} parent=0 // pred_region
    _
  $region21: #{dice_loss.1} parent=0 // pred_fallthru
    _
  // Predicated region
  $region22: #{dice_loss.1} parent=0 // pred_check
    _
  $region23: #{dice_loss.1} parent=0 // pred_check_branch
    %104 = sbr.rel (0) target = $region25
  $region24: #{dice_loss.1} parent=0 // pred_region
    _
  $region25: #{dice_loss.1} parent=0 // pred_fallthru
    _
  // Predicated region
  $region26: #{dice_loss.1} parent=0 // pred_check
    _
  $region27: #{dice_loss.1} parent=0 // pred_check_branch
    %106 = sbr.rel (0) target = $region29
  $region28: #{dice_loss.1} parent=0 // pred_region
    _
  $region29: #{dice_loss.1} parent=0 // pred_fallthru
    _

</llo_original>
